<compile_context>
chip_gen: v6e
topology: v6e:2x2x1
jax: 0.10.0
libtpu: 0.0.40
codegen_flags: <defaults>
</compile_context>

<pallas_src>
import jax
import jax.numpy as jnp
from jax import lax
from jax.experimental import pallas as pl
from jax.experimental.pallas import tpu as pltpu


def _mlp_kernel(x_ref, w1_ref, b1_ref, w2_ref, b2_ref, w3_ref, b3_ref, o_ref):
    # x_ref: (TB, in) in native PyTorch layout. Contract its last dim against
    # w1's last dim -> (h1, TB): batch lands on the lane axis for the rest of
    # the network (lane-dense activations and output stores).
    h = lax.dot_general(
        w1_ref[...], x_ref[...],
        dimension_numbers=(((1,), (1,)), ((), ())),
        preferred_element_type=jnp.float32)
    h = jnp.maximum(h + b1_ref[...], 0.0)

    h = jnp.dot(w2_ref[...], h, preferred_element_type=jnp.float32)
    h = jnp.maximum(h + b2_ref[...], 0.0)

    out = jnp.dot(w3_ref[...], h, preferred_element_type=jnp.float32) + b3_ref[...]
    o_ref[...] = out.astype(o_ref.dtype)


def simple_nn_forward(x, params, *, tile_b=8192):
    """Fused forward pass of SimpleNNModel (all-f32).

    x:      (B, input_features) float32, PyTorch layout.
    params: PyTorch-native Linear layouts:
            w1 (h1, in), b1 (h1,), w2 (h2, h1), b2 (h2,), w3 (out, h2), b3 (out,)
    Returns (B, out_features) float32.

    tile_b is the batch-lane tile for large B; it is a sweep parameter.
    Default 8192 needs ~10 MiB VMEM (the narrow (tile_b, 8) x block is
    lane-padded to 128 in VMEM), safe on v5e/v6e/v7x with the 32 MiB limit set
    below. On v7x, use a smaller tile_b if you want >= 2 tiles so both
    TensorCores get work.
    """
    B, in_features = x.shape
    h1 = params["w1"].shape[0]
    h2 = params["w2"].shape[0]
    out_features = params["w3"].shape[0]

    x = x.astype(jnp.float32)

    if B <= tile_b:
        # Single full-array block: no padding, no pipelining overhead.
        tile, n_tiles, b_pad = B, 1, B
        x_in = x
    else:
        assert tile_b % 128 == 0, "tile_b must be a multiple of 128"
        tile = tile_b
        n_tiles = pl.cdiv(B, tile)
        b_pad = n_tiles * tile
        # Zero-padded rows are computed and sliced away below (harmless).
        x_in = jnp.pad(x, ((0, b_pad - B), (0, 0)))

    w1 = params["w1"].astype(jnp.float32)
    w2 = params["w2"].astype(jnp.float32)
    w3 = params["w3"].astype(jnp.float32)
    # (n, 1) biases broadcast along the lane (batch) axis inside the kernel.
    b1 = params["b1"].astype(jnp.float32).reshape(h1, 1)
    b2 = params["b2"].astype(jnp.float32).reshape(h2, 1)
    b3 = params["b3"].astype(jnp.float32).reshape(out_features, 1)

    # Grid-invariant full blocks: weights/biases are DMA'd once and stay
    # resident in VMEM across all batch tiles.
    full = lambda a: pl.BlockSpec(a.shape, lambda i: (0, 0))

    out_t = pl.pallas_call(
        _mlp_kernel,
        out_shape=jax.ShapeDtypeStruct((out_features, b_pad), jnp.float32),
        grid=(n_tiles,),
        in_specs=[
            pl.BlockSpec((tile, in_features), lambda i: (i, 0)),  # stream x
            full(w1), full(b1), full(w2), full(b2), full(w3), full(b3),
        ],
        out_specs=pl.BlockSpec((out_features, tile), lambda i: (0, i)),
        compiler_params=pltpu.CompilerParams(
            dimension_semantics=("parallel",),      # batch tiles across TCs (v7x)
            vmem_limit_bytes=32 * 1024 * 1024,      # keep double-buffering on v5e
        ),
    )(x_in, w1, b1, w2, b2, w3, b3)

    # Output leaves the kernel lane-dense as (out_features, B); the tiny
    # (2, B) -> (B, 2) transpose is wrapper-side layout plumbing.
    return out_t[:, :B].T


def init_params(key, input_features=8, hidden1=20, hidden2=10, out_features=2):
    """PyTorch nn.Linear default init: U(-1/sqrt(fan_in), 1/sqrt(fan_in)),
    weights stored in PyTorch-native (out_features, in_features) layout."""
    def linear(k, fan_in, fan_out):
        kw, kb = jax.random.split(k)
        bound = 1.0 / jnp.sqrt(fan_in)
        w = jax.random.uniform(kw, (fan_out, fan_in), jnp.float32, -bound, bound)
        b = jax.random.uniform(kb, (fan_out,), jnp.float32, -bound, bound)
        return w, b

    k1, k2, k3 = jax.random.split(key, 3)
    w1, b1 = linear(k1, input_features, hidden1)
    w2, b2 = linear(k2, hidden1, hidden2)
    w3, b3 = linear(k3, hidden2, out_features)
    return {"w1": w1, "b1": b1, "w2": w2, "b2": b2, "w3": w3, "b3": b3}


def reference_forward(x, p):
    """Pure-JAX f32 reference (highest-precision dots)."""
    prec = jax.lax.Precision.HIGHEST
    h = jnp.maximum(jnp.dot(x, p["w1"].T, precision=prec) + p["b1"], 0.0)
    h = jnp.maximum(jnp.dot(h, p["w2"].T, precision=prec) + p["b2"], 0.0)
    return jnp.dot(h, p["w3"].T, precision=prec) + p["b3"]


if __name__ == "__main__":
    key = jax.random.PRNGKey(0)
    k_params, k_x1, k_x2 = jax.random.split(key, 3)

    input_features = 8
    params = init_params(k_params, input_features=input_features,
                         hidden1=20, hidden2=10, out_features=2)

    # 1) Small batch (matches the test's tiny demo) -> single-tile fast path.
    batch = 8
    x_small = jax.random.normal(k_x1, (batch, input_features), jnp.float32)
    out_small = jax.block_until_ready(simple_nn_forward(x_small, params))
    assert out_small.shape == (batch, 2), out_small.shape
    ref_small = reference_forward(x_small, params)
    assert jnp.allclose(out_small, ref_small, atol=1e-3, rtol=1e-3), \
        float(jnp.max(jnp.abs(out_small - ref_small)))

    # 2) Multi-tile grid path (exercises batch padding + pipelined x stream).
    batch_big = 300
    x_big = jax.random.normal(k_x2, (batch_big, input_features), jnp.float32)
    out_big = jax.block_until_ready(simple_nn_forward(x_big, params, tile_b=128))
    assert out_big.shape == (batch_big, 2), out_big.shape
    ref_big = reference_forward(x_big, params)
    assert jnp.allclose(out_big, ref_big, atol=1e-3, rtol=1e-3), \
        float(jnp.max(jnp.abs(out_big - ref_big)))

    print("KERNEL_OK")
</pallas_src>

<mosaic_0001>
module attributes {stable_mosaic.version = 11 : i64} {
  func.func @_mlp_kernel(%arg0: i32, %arg1: memref<8x8xf32, #tpu.memory_space<vmem>>, %arg2: memref<20x8xf32, #tpu.memory_space<vmem>>, %arg3: memref<20x1xf32, #tpu.memory_space<vmem>>, %arg4: memref<10x20xf32, #tpu.memory_space<vmem>>, %arg5: memref<10x1xf32, #tpu.memory_space<vmem>>, %arg6: memref<2x10xf32, #tpu.memory_space<vmem>>, %arg7: memref<2x1xf32, #tpu.memory_space<vmem>>, %arg8: memref<2x8xf32, #tpu.memory_space<vmem>>) attributes {dimension_semantics = [#tpu.dimension_semantics<parallel>], iteration_bounds = array<i64: 1>, scalar_prefetch = 0 : i64, scratch_operands = 0 : i64, tpu.core_type = #tpu.core_type<tc>, window_params = [{transform_indices = @transform_0, window_bounds = array<i64: 8, 8>}, {pipeline_mode = #tpu.pipeline_mode<synchronous>, transform_indices = @transform_1, window_bounds = array<i64: 20, 8>}, {pipeline_mode = #tpu.pipeline_mode<synchronous>, transform_indices = @transform_2, window_bounds = array<i64: 20, 1>}, {pipeline_mode = #tpu.pipeline_mode<synchronous>, transform_indices = @transform_3, window_bounds = array<i64: 10, 20>}, {pipeline_mode = #tpu.pipeline_mode<synchronous>, transform_indices = @transform_4, window_bounds = array<i64: 10, 1>}, {pipeline_mode = #tpu.pipeline_mode<synchronous>, transform_indices = @transform_5, window_bounds = array<i64: 2, 10>}, {pipeline_mode = #tpu.pipeline_mode<synchronous>, transform_indices = @transform_6, window_bounds = array<i64: 2, 1>}, {transform_indices = @transform_7, window_bounds = array<i64: 2, 8>}]} {
    %c0 = arith.constant 0 : index
    %c0_0 = arith.constant 0 : index
    %0 = vector.load %arg2[%c0, %c0_0] : memref<20x8xf32, #tpu.memory_space<vmem>>, vector<20x8xf32>
    %c0_1 = arith.constant 0 : index
    %c0_2 = arith.constant 0 : index
    %1 = vector.load %arg1[%c0_1, %c0_2] : memref<8x8xf32, #tpu.memory_space<vmem>>, vector<8x8xf32>
    %cst = arith.constant dense<0.000000e+00> : vector<20x8xf32>
    %2 = tpu.matmul %0, %1, %cst {dimension_numbers = #tpu.dot_dimension_numbers<[1], [1], [0], [0], [0, 0, 1, 0], [], []>} : vector<20x8xf32>, vector<8x8xf32>, vector<20x8xf32> -> vector<20x8xf32>
    %c0_3 = arith.constant 0 : index
    %c0_4 = arith.constant 0 : index
    %3 = vector.load %arg3[%c0_3, %c0_4] : memref<20x1xf32, #tpu.memory_space<vmem>>, vector<20x1xf32>
    %4 = vector.broadcast %3 : vector<20x1xf32> to vector<20x8xf32>
    %5 = arith.addf %2, %4 : vector<20x8xf32>
    %cst_5 = arith.constant 0.000000e+00 : f32
    %6 = vector.broadcast %cst_5 : f32 to vector<20x8xf32>
    %7 = arith.maximumf %5, %6 : vector<20x8xf32>
    %c0_6 = arith.constant 0 : index
    %c0_7 = arith.constant 0 : index
    %8 = vector.load %arg4[%c0_6, %c0_7] : memref<10x20xf32, #tpu.memory_space<vmem>>, vector<10x20xf32>
    %cst_8 = arith.constant dense<0.000000e+00> : vector<10x8xf32>
    %9 = tpu.matmul %8, %7, %cst_8 {dimension_numbers = #tpu.dot_dimension_numbers<[1], [0], [0], [1], [0, 0, 1, 1], [], []>} : vector<10x20xf32>, vector<20x8xf32>, vector<10x8xf32> -> vector<10x8xf32>
    %c0_9 = arith.constant 0 : index
    %c0_10 = arith.constant 0 : index
    %10 = vector.load %arg5[%c0_9, %c0_10] : memref<10x1xf32, #tpu.memory_space<vmem>>, vector<10x1xf32>
    %11 = vector.broadcast %10 : vector<10x1xf32> to vector<10x8xf32>
    %12 = arith.addf %9, %11 : vector<10x8xf32>
    %cst_11 = arith.constant 0.000000e+00 : f32
    %13 = vector.broadcast %cst_11 : f32 to vector<10x8xf32>
    %14 = arith.maximumf %12, %13 : vector<10x8xf32>
    %c0_12 = arith.constant 0 : index
    %c0_13 = arith.constant 0 : index
    %15 = vector.load %arg6[%c0_12, %c0_13] : memref<2x10xf32, #tpu.memory_space<vmem>>, vector<2x10xf32>
    %cst_14 = arith.constant dense<0.000000e+00> : vector<2x8xf32>
    %16 = tpu.matmul %15, %14, %cst_14 {dimension_numbers = #tpu.dot_dimension_numbers<[1], [0], [0], [1], [0, 0, 1, 1], [], []>} : vector<2x10xf32>, vector<10x8xf32>, vector<2x8xf32> -> vector<2x8xf32>
    %c0_15 = arith.constant 0 : index
    %c0_16 = arith.constant 0 : index
    %17 = vector.load %arg7[%c0_15, %c0_16] : memref<2x1xf32, #tpu.memory_space<vmem>>, vector<2x1xf32>
    %18 = vector.broadcast %17 : vector<2x1xf32> to vector<2x8xf32>
    %19 = arith.addf %16, %18 : vector<2x8xf32>
    %c0_17 = arith.constant 0 : index
    %c0_18 = arith.constant 0 : index
    %20 = vector.load %arg8[%c0_17, %c0_18] : memref<2x8xf32, #tpu.memory_space<vmem>>, vector<2x8xf32>
    tpu.vector_store %arg8[%c0_17, %c0_18], %19 {strides = array<i32>} : memref<2x8xf32, #tpu.memory_space<vmem>>, vector<2x8xf32>,
    return
  }
  func.func @transform_0(%arg0: i32) -> (i32, i32) {
    %c0_i32 = arith.constant 0 : i32
    %c0_i32_0 = arith.constant 0 : i32
    return %arg0, %c0_i32 : i32, i32
  }
  func.func @transform_1(%arg0: i32) -> (i32, i32) {
    %c0_i32 = arith.constant 0 : i32
    %c0_i32_0 = arith.constant 0 : i32
    %c0_i32_1 = arith.constant 0 : i32
    return %c0_i32, %c0_i32_0 : i32, i32
  }
  func.func @transform_2(%arg0: i32) -> (i32, i32) {
    %c0_i32 = arith.constant 0 : i32
    %c0_i32_0 = arith.constant 0 : i32
    %c0_i32_1 = arith.constant 0 : i32
    return %c0_i32, %c0_i32_0 : i32, i32
  }
  func.func @transform_3(%arg0: i32) -> (i32, i32) {
    %c0_i32 = arith.constant 0 : i32
    %c0_i32_0 = arith.constant 0 : i32
    %c0_i32_1 = arith.constant 0 : i32
    return %c0_i32, %c0_i32_0 : i32, i32
  }
  func.func @transform_4(%arg0: i32) -> (i32, i32) {
    %c0_i32 = arith.constant 0 : i32
    %c0_i32_0 = arith.constant 0 : i32
    %c0_i32_1 = arith.constant 0 : i32
    return %c0_i32, %c0_i32_0 : i32, i32
  }
  func.func @transform_5(%arg0: i32) -> (i32, i32) {
    %c0_i32 = arith.constant 0 : i32
    %c0_i32_0 = arith.constant 0 : i32
    %c0_i32_1 = arith.constant 0 : i32
    return %c0_i32, %c0_i32_0 : i32, i32
  }
  func.func @transform_6(%arg0: i32) -> (i32, i32) {
    %c0_i32 = arith.constant 0 : i32
    %c0_i32_0 = arith.constant 0 : i32
    %c0_i32_1 = arith.constant 0 : i32
    return %c0_i32, %c0_i32_0 : i32, i32
  }
  func.func @transform_7(%arg0: i32) -> (i32, i32) {
    %c0_i32 = arith.constant 0 : i32
    %c0_i32_0 = arith.constant 0 : i32
    return %c0_i32, %arg0 : i32, i32
  }
}

</mosaic_0001>

<llo_original>
// kernel: tpu_custom_call.1
$region0: #{tpu_custom_call.1}
  #allocation0 [shape = 'u32[]', space=smem, size = 0x4, offset = 0x4, fixed_abs, tag = 'smem constant byte address 0x4 - core index']
  #allocation1 [shape = 'u32[144,128]{1,0:T(1,128)}', space=vmem, size = 0x12000, scoped, tag = 'internal scratch']
  %s0 = inlined_call_operand.vmem [shape: f32[8,8], index: 0, kind: input, shape index: {}]
  %s1 = inlined_call_operand.vmem [shape: f32[20,8], index: 1, kind: input, shape index: {}]
  %s2 = inlined_call_operand.vmem [shape: f32[20,1], index: 2, kind: input, shape index: {}]
  %s3 = inlined_call_operand.vmem [shape: f32[10,20], index: 3, kind: input, shape index: {}]
  %s4 = inlined_call_operand.vmem [shape: f32[10,1], index: 4, kind: input, shape index: {}]
  %s5 = inlined_call_operand.vmem [shape: f32[2,10], index: 5, kind: input, shape index: {}]
  %s6 = inlined_call_operand.vmem [shape: f32[2,1], index: 6, kind: input, shape index: {}]
  %s7 = inlined_call_operand.hbm [shape: f32[2,8], index: 7, kind: output, shape index: {}]
  %s8 = sld [smem:[#allocation0]]
  $region38: #{tpu_custom_call.1} parent=0
    _
  %s10 = ssub.s32 1, %s8
  %s11 = scalar_select 0, %s10, %s8
  $region1: #{tpu_custom_call.1} parent=0
    #allocation2 [shape = 'u8[1024]{0}', space=vmem, size = 0x400, scoped, tag = 'output window, operand 0, single buffered']
    #allocation3 [shape = 's32[1]{0}', space=sflag, size = 0x4, scoped, tag = 'scoped memory for tpu_custom_call.1']
    %12 = vsyncpa [#allocation3], 0
    // Predicated region
    $region2: #{tpu_custom_call.1} parent=1 // pred_check
      _
    $region3: #{tpu_custom_call.1} parent=1 // pred_check_branch
      %14 = sbr.rel (0) target = $region5
    $region4: #{tpu_custom_call.1} parent=1 // pred_region
      _
    $region5: #{tpu_custom_call.1} parent=1 // pred_fallthru
      _
    // Predicated region
    $region6: #{tpu_custom_call.1} parent=1 // pred_check
      _
    $region7: #{tpu_custom_call.1} parent=1 // pred_check_branch
      %16 = sbr.rel (0) target = $region9
    $region8: #{tpu_custom_call.1} parent=1 // pred_region
      _
    $region9: #{tpu_custom_call.1} parent=1 // pred_fallthru
      _
    // Predicated region
    $region10: #{tpu_custom_call.1} parent=1 // pred_check
      _
    $region11: #{tpu_custom_call.1} parent=1 // pred_check_branch
      %18 = sbr.rel (0) target = $region13
    $region12: #{tpu_custom_call.1} parent=1 // pred_region
      _
    $region13: #{tpu_custom_call.1} parent=1 // pred_fallthru
      _
    // Predicated region
    $region14: #{tpu_custom_call.1} parent=1 // pred_check
      _
    $region15: #{tpu_custom_call.1} parent=1 // pred_check_branch
      %20 = sbr.rel (0) target = $region17
    $region16: #{tpu_custom_call.1} parent=1 // pred_region
      _
    $region17: #{tpu_custom_call.1} parent=1 // pred_fallthru
      _
    // Predicated region
    $region18: #{tpu_custom_call.1} parent=1 // pred_check
      _
    $region19: #{tpu_custom_call.1} parent=1 // pred_check_branch
      %22 = sbr.rel (0) target = $region21
    $region20: #{tpu_custom_call.1} parent=1 // pred_region
      _
    $region21: #{tpu_custom_call.1} parent=1 // pred_fallthru
      _
    // Predicated region
    $region22: #{tpu_custom_call.1} parent=1 // pred_check
      _
    $region23: #{tpu_custom_call.1} parent=1 // pred_check_branch
      %24 = sbr.rel (0) target = $region25
    $region24: #{tpu_custom_call.1} parent=1 // pred_region
      _
    $region25: #{tpu_custom_call.1} parent=1 // pred_fallthru
      _
    // Predicated region
    $region26: #{tpu_custom_call.1} parent=1 // pred_check
      _
    $region27: #{tpu_custom_call.1} parent=1 // pred_check_branch
      %26 = sbr.rel (0) target = $region29
    $region28: #{tpu_custom_call.1} parent=1 // pred_region
      _
    $region29: #{tpu_custom_call.1} parent=1 // pred_fallthru
      _
    %v27 = vld [vmem:[%s1] sm:$0xff]
    %v28 = vld [vmem:[%s1 + $0x8] sm:$0xff]
    %v29 = vld [vmem:[%s1 + $0x10] sm:$0xf]
    %v30 = vld [vmem:[%s0] sm:$0xff]
    %v31 = vld [vmem:[%s2] sm:$0xff]
    %v32 = vld [vmem:[%s2 + $0x8] sm:$0xff]
    %v33 = vld [vmem:[%s2 + $0x10] sm:$0xf]
    %35 = vset.pattern.permute.xlu0 0
    %36 = vperm.xlu0 %35, %v31
    %v37 = vpop.permute.xlu0 %36
    %40 = vset.pattern.permute.xlu0 0
    %41 = vperm.xlu0 %40, %v32
    %v42 = vpop.permute.xlu0 %41
    %45 = vset.pattern.permute.xlu0 0
    %46 = vperm.xlu0 %45, %v33
    %v47 = vpop.permute.xlu0 %46
    %vm49 = vcmask 64512
    %v51 = vsel %vm49, %v27, 0
    %v54 = vsel %vm49, %v28, 0
    %v57 = vsel %vm49, %v29, 0
    %v60 = vsel %vm49, %v30, 0
    %62 = vmatprep.subr.mxu0 0.0
    %63 = vmatpush1.xpose.msra.mxu0 0.0
    %64 = vmatprep.subr.mxu0 0.0
    %65 = vmatpush1.xpose.msra.mxu0 0.0
    %66 = vmatprep.subr.mxu0 0.0
    %67 = vmatpush1.xpose.msra.mxu0 0.0
    %68 = vmatprep.subr.mxu0 0.0
    %69 = vmatpush1.xpose.msra.mxu0 0.0
    %70 = vmatprep.subr.mxu0 0.0
    %71 = vmatpush1.xpose.msra.mxu0 0.0
    %72 = vmatprep.subr.mxu0 0.0
    %73 = vmatpush1.xpose.msra.mxu0 0.0
    %74 = vmatprep.subr.mxu0 0.0
    %75 = vmatpush1.xpose.msra.mxu0 0.0
    %76 = vmatprep.subr.mxu0 0.0
    %77 = vmatpush1.xpose.msra.mxu0 0.0
    %78 = vmatprep.subr.mxu0 0.0
    %79 = vmatpush1.xpose.msra.mxu0 0.0
    %80 = vmatprep.subr.mxu0 0.0
    %81 = vmatpush1.xpose.msra.mxu0 0.0
    %82 = vmatprep.subr.mxu0 0.0
    %83 = vmatpush1.xpose.msra.mxu0 0.0
    %84 = vmatprep.subr.mxu0 0.0
    %85 = vmatpush1.xpose.msra.mxu0 0.0
    %86 = vmatprep.subr.mxu0 0.0
    %87 = vmatpush1.xpose.msra.mxu0 0.0
    %88 = vmatprep.subr.mxu0 0.0
    %89 = vmatpush1.xpose.msra.mxu0 0.0
    %90 = vmatprep.subr.mxu0 0.0
    %91 = vmatpush1.xpose.msra.mxu0 0.0
    %92 = vmatprep.subr.mxu0 0.0
    %93 = vmatpush1.xpose.msra.mxu0 %v60
    %94 = vmatprep.subr.mxu0 0.0
    %95 = vmatpush2.xpose.msra.mxu0 0.0
    %96 = vmatprep.subr.mxu0 0.0
    %97 = vmatpush2.xpose.msra.mxu0 0.0
    %98 = vmatprep.subr.mxu0 0.0
    %99 = vmatpush2.xpose.msra.mxu0 0.0
    %100 = vmatprep.subr.mxu0 0.0
    %101 = vmatpush2.xpose.msra.mxu0 0.0
    %102 = vmatprep.subr.mxu0 0.0
    %103 = vmatpush2.xpose.msra.mxu0 0.0
    %104 = vmatprep.subr.mxu0 0.0
    %105 = vmatpush2.xpose.msra.mxu0 0.0
    %106 = vmatprep.subr.mxu0 0.0
    %107 = vmatpush2.xpose.msra.mxu0 0.0
    %108 = vmatprep.subr.mxu0 0.0
    %109 = vmatpush2.xpose.msra.mxu0 0.0
    %110 = vmatprep.subr.mxu0 0.0
    %111 = vmatpush2.xpose.msra.mxu0 0.0
    %112 = vmatprep.subr.mxu0 0.0
    %113 = vmatpush2.xpose.msra.mxu0 0.0
    %114 = vmatprep.subr.mxu0 0.0
    %115 = vmatpush2.xpose.msra.mxu0 0.0
    %116 = vmatprep.subr.mxu0 0.0
    %117 = vmatpush2.xpose.msra.mxu0 0.0
    %118 = vmatprep.subr.mxu0 0.0
    %119 = vmatpush2.xpose.msra.mxu0 0.0
    %120 = vmatprep.subr.mxu0 0.0
    %121 = vmatpush2.xpose.msra.mxu0 0.0
    %122 = vmatprep.subr.mxu0 0.0
    %123 = vmatpush2.xpose.msra.mxu0 0.0
    %124 = vmatprep.subr.mxu0 0.0
    %125 = vmatpush2.xpose.msra.mxu0 0.0
    %126 = vmatprep.mubr.f32.mxu0 0.0
    %127 = vmatmul.mubr.f32.gmra.mxu0 %v51
    %v128 = vpop.f32.mrf.mxu0
    %v129 = vadd.f32 %v37, %v128
    %v130 = vpop.f32.mrf.mxu0
    %131 = vmatprep.mubr.f32.mxu0 0.0
    %132 = vmatmul.mubr.f32.gmra.mxu0 %v54
    %v133 = vpop.f32.mrf.mxu0
    %v134 = vadd.f32 %v42, %v133
    %v135 = vpop.f32.mrf.mxu0
    %136 = vmatprep.mubr.f32.mxu0 0.0
    %137 = vmatmul.mubr.f32.gmra.mxu0 %v57
    %v138 = vpop.f32.mrf.mxu0
    %v139 = vadd.f32 %v47, %v138
    %v140 = vpop.f32.mrf.mxu0
    %141 = vdwg.mxu0
    %v142 = vmax.f32 %v129, 0.0
    %v143 = vmax.f32 %v134, 0.0
    %v144 = vmax.f32 %v139, 0.0
    %v145 = vld [vmem:[%s3] sm:$0xff]
    %v146 = vld [vmem:[%s3 + $0x8] sm:$0x3]
    %v147 = vld [vmem:[%s4] sm:$0xff]
    %v148 = vld [vmem:[%s4 + $0x8] sm:$0x3]
    %150 = vset.pattern.permute.xlu0 0
    %151 = vperm.xlu0 %150, %v147
    %v152 = vpop.permute.xlu0 %151
    %155 = vset.pattern.permute.xlu0 0
    %156 = vperm.xlu0 %155, %v148
    %v157 = vpop.permute.xlu0 %156
    %vm159 = vcmask 162816
    %v161 = vsel %vm159, %v145, 0
    %v164 = vsel %vm159, %v146, 0
    %vm166 = vcmask 1043456
    %v168 = vsel %vm166, %v144, 0
    %170 = vmatprep.subr.mxu0 0.0
    %171 = vmatpush1.msra.mxu0 0.0
    %172 = vmatprep.subr.mxu0 0.0
    %173 = vmatpush1.msra.mxu0 0.0
    %174 = vmatprep.subr.mxu0 0.0
    %175 = vmatpush1.msra.mxu0 0.0
    %176 = vmatprep.subr.mxu0 0.0
    %177 = vmatpush1.msra.mxu0 0.0
    %178 = vmatprep.subr.mxu0 0.0
    %179 = vmatpush1.msra.mxu0 0.0
    %180 = vmatprep.subr.mxu0 0.0
    %181 = vmatpush1.msra.mxu0 0.0
    %182 = vmatprep.subr.mxu0 0.0
    %183 = vmatpush1.msra.mxu0 0.0
    %184 = vmatprep.subr.mxu0 0.0
    %185 = vmatpush1.msra.mxu0 0.0
    %186 = vmatprep.subr.mxu0 0.0
    %187 = vmatpush1.msra.mxu0 0.0
    %188 = vmatprep.subr.mxu0 0.0
    %189 = vmatpush1.msra.mxu0 0.0
    %190 = vmatprep.subr.mxu0 0.0
    %191 = vmatpush1.msra.mxu0 0.0
    %192 = vmatprep.subr.mxu0 0.0
    %193 = vmatpush1.msra.mxu0 0.0
    %194 = vmatprep.subr.mxu0 0.0
    %195 = vmatpush1.msra.mxu0 0.0
    %196 = vmatprep.subr.mxu0 0.0
    %197 = vmatpush1.msra.mxu0 %v168
    %198 = vmatprep.subr.mxu0 0.0
    %199 = vmatpush1.msra.mxu0 %v143
    %200 = vmatprep.subr.mxu0 0.0
    %201 = vmatpush1.msra.mxu0 %v142
    %202 = vmatprep.subr.mxu0 0.0
    %203 = vmatpush2.msra.mxu0 0.0
    %204 = vmatprep.subr.mxu0 0.0
    %205 = vmatpush2.msra.mxu0 0.0
    %206 = vmatprep.subr.mxu0 0.0
    %207 = vmatpush2.msra.mxu0 0.0
    %208 = vmatprep.subr.mxu0 0.0
    %209 = vmatpush2.msra.mxu0 0.0
    %210 = vmatprep.subr.mxu0 0.0
    %211 = vmatpush2.msra.mxu0 0.0
    %212 = vmatprep.subr.mxu0 0.0
    %213 = vmatpush2.msra.mxu0 0.0
    %214 = vmatprep.subr.mxu0 0.0
    %215 = vmatpush2.msra.mxu0 0.0
    %216 = vmatprep.subr.mxu0 0.0
    %217 = vmatpush2.msra.mxu0 0.0
    %218 = vmatprep.subr.mxu0 0.0
    %219 = vmatpush2.msra.mxu0 0.0
    %220 = vmatprep.subr.mxu0 0.0
    %221 = vmatpush2.msra.mxu0 0.0
    %222 = vmatprep.subr.mxu0 0.0
    %223 = vmatpush2.msra.mxu0 0.0
    %224 = vmatprep.subr.mxu0 0.0
    %225 = vmatpush2.msra.mxu0 0.0
    %226 = vmatprep.subr.mxu0 0.0
    %227 = vmatpush2.msra.mxu0 0.0
    %228 = vmatprep.subr.mxu0 0.0
    %229 = vmatpush2.msra.mxu0 0.0
    %230 = vmatprep.subr.mxu0 0.0
    %231 = vmatpush2.msra.mxu0 0.0
    %232 = vmatprep.subr.mxu0 0.0
    %233 = vmatpush2.msra.mxu0 0.0
    %234 = vmatprep.mubr.f32.mxu0 0.0
    %235 = vmatmul.mubr.f32.gmra.mxu0 %v161
    %v236 = vpop.f32.mrf.mxu0
    %v237 = vadd.f32 %v152, %v236
    %v238 = vpop.f32.mrf.mxu0
    %239 = vmatprep.mubr.f32.mxu0 0.0
    %240 = vmatmul.mubr.f32.gmra.mxu0 %v164
    %v241 = vpop.f32.mrf.mxu0
    %v242 = vadd.f32 %v157, %v241
    %v243 = vpop.f32.mrf.mxu0
    %244 = vdwg.mxu0
    %v245 = vmax.f32 %v237, 0.0
    %v246 = vmax.f32 %v242, 0.0
    %v247 = vld [vmem:[%s5] sm:$0x3]
    %v248 = vld [vmem:[%s6] sm:$0x3]
    %250 = vset.pattern.permute.xlu0 0
    %251 = vperm.xlu0 %250, %v248
    %v252 = vpop.permute.xlu0 %251
    %vm254 = vcmask 80896
    %v256 = vsel %vm254, %v247, 0
    %vm258 = vcmask 1041408
    %v260 = vsel %vm258, %v246, 0
    %262 = vmatprep.subr.mxu0 0.0
    %263 = vmatpush1.msra.mxu0 0.0
    %264 = vmatprep.subr.mxu0 0.0
    %265 = vmatpush1.msra.mxu0 0.0
    %266 = vmatprep.subr.mxu0 0.0
    %267 = vmatpush1.msra.mxu0 0.0
    %268 = vmatprep.subr.mxu0 0.0
    %269 = vmatpush1.msra.mxu0 0.0
    %270 = vmatprep.subr.mxu0 0.0
    %271 = vmatpush1.msra.mxu0 0.0
    %272 = vmatprep.subr.mxu0 0.0
    %273 = vmatpush1.msra.mxu0 0.0
    %274 = vmatprep.subr.mxu0 0.0
    %275 = vmatpush1.msra.mxu0 0.0
    %276 = vmatprep.subr.mxu0 0.0
    %277 = vmatpush1.msra.mxu0 0.0
    %278 = vmatprep.subr.mxu0 0.0
    %279 = vmatpush1.msra.mxu0 0.0
    %280 = vmatprep.subr.mxu0 0.0
    %281 = vmatpush1.msra.mxu0 0.0
    %282 = vmatprep.subr.mxu0 0.0
    %283 = vmatpush1.msra.mxu0 0.0
    %284 = vmatprep.subr.mxu0 0.0
    %285 = vmatpush1.msra.mxu0 0.0
    %286 = vmatprep.subr.mxu0 0.0
    %287 = vmatpush1.msra.mxu0 0.0
    %288 = vmatprep.subr.mxu0 0.0
    %289 = vmatpush1.msra.mxu0 0.0
    %290 = vmatprep.subr.mxu0 0.0
    %291 = vmatpush1.msra.mxu0 %v260
    %292 = vmatprep.subr.mxu0 0.0
    %293 = vmatpush1.msra.mxu0 %v245
    %294 = vmatprep.subr.mxu0 0.0
    %295 = vmatpush2.msra.mxu0 0.0
    %296 = vmatprep.subr.mxu0 0.0
    %297 = vmatpush2.msra.mxu0 0.0
    %298 = vmatprep.subr.mxu0 0.0
    %299 = vmatpush2.msra.mxu0 0.0
    %300 = vmatprep.subr.mxu0 0.0
    %301 = vmatpush2.msra.mxu0 0.0
    %302 = vmatprep.subr.mxu0 0.0
    %303 = vmatpush2.msra.mxu0 0.0
    %304 = vmatprep.subr.mxu0 0.0
    %305 = vmatpush2.msra.mxu0 0.0
    %306 = vmatprep.subr.mxu0 0.0
    %307 = vmatpush2.msra.mxu0 0.0
    %308 = vmatprep.subr.mxu0 0.0
    %309 = vmatpush2.msra.mxu0 0.0
    %310 = vmatprep.subr.mxu0 0.0
    %311 = vmatpush2.msra.mxu0 0.0
    %312 = vmatprep.subr.mxu0 0.0
    %313 = vmatpush2.msra.mxu0 0.0
    %314 = vmatprep.subr.mxu0 0.0
    %315 = vmatpush2.msra.mxu0 0.0
    %316 = vmatprep.subr.mxu0 0.0
    %317 = vmatpush2.msra.mxu0 0.0
    %318 = vmatprep.subr.mxu0 0.0
    %319 = vmatpush2.msra.mxu0 0.0
    %320 = vmatprep.subr.mxu0 0.0
    %321 = vmatpush2.msra.mxu0 0.0
    %322 = vmatprep.subr.mxu0 0.0
    %323 = vmatpush2.msra.mxu0 0.0
    %324 = vmatprep.subr.mxu0 0.0
    %325 = vmatpush2.msra.mxu0 0.0
    %326 = vmatprep.mubr.f32.mxu0 0.0
    %327 = vmatmul.mubr.f32.gmra.mxu0 %v256
    %v328 = vpop.f32.mrf.mxu0
    %v329 = vadd.f32 %v252, %v328
    %v330 = vpop.f32.mrf.mxu0
    %331 = vdwg.mxu0
    %vm332 = vcmask 58368
    %333 = vst.msk [vmem:[#allocation2] sm:$0x3] %vm332, %v329
    // Predicated region
    $region30: #{tpu_custom_call.1} parent=1 // pred_check
      _
    $region31: #{tpu_custom_call.1} parent=1 // pred_check_branch
      %335 = sbr.rel (0) target = $region33
    $region32: #{tpu_custom_call.1} parent=1 // pred_region
      %s337 = ssub.s32 32, 32
      %338 = vsyncadd [#allocation3], %s337
      %s340 = sshll.u32 [#allocation2], 4
      %s341 = int_to_ptr.vmem [resolvable:$true] %s340
      %343 = dma.vmem_to_hbm [thread:$0]  %s341, 32, %s7, [#allocation3]
    $region33: #{tpu_custom_call.1} parent=1 // pred_fallthru
      _
    // Predicated region
    $region34: #{tpu_custom_call.1} parent=1 // pred_check
      _
    $region35: #{tpu_custom_call.1} parent=1 // pred_check_branch
      %345 = sbr.rel (0) target = $region37
    $region36: #{tpu_custom_call.1} parent=1 // pred_region
      %346 = dma.done [#allocation3], 32
    $region37: #{tpu_custom_call.1} parent=1 // pred_fallthru
      _
    %347 = vsyncpa [#allocation3], 1

</llo_original>
